<compile_context>
chip_gen: v5e
topology: v5e:2x2
jax: 0.10.0
libtpu: 0.0.40
codegen_flags: <defaults>
</compile_context>

<pallas_src>
import jax
import jax.numpy as jnp
from jax.experimental import pallas as pl
from jax.experimental.pallas import tpu as pltpu


def _linear_kernel(x_ref, w_ref, b_ref, o_ref):
    # x_ref: (tb, D) f32/bf16, w_ref: (D, Cp) bf16, b_ref: (1, Cp) f32,
    # o_ref: (tb, Cp) f32 or bf16
    x_bf = x_ref[...].astype(jnp.bfloat16)          # in-kernel cast (VPU)
    acc = jnp.dot(x_bf, w_ref[...], preferred_element_type=jnp.float32)
    o_ref[...] = (acc + b_ref[...]).astype(o_ref.dtype)


def prepare_feat_classifier_params(weight, bias, *, lane=128,
                                    param_dtype=jnp.bfloat16):
    """One-time parameter prep (do NOT call per forward step).

    weight: (C, D) PyTorch nn.Linear layout; bias: (C,)
    Returns:
      w_p: (D, Cp) param_dtype   -- transposed + zero-padded to lane-dense Cp
      b_p: (1, Cp) float32       -- zero-padded bias row
    """
    C, D = weight.shape
    Cp = ((C + lane - 1) // lane) * lane            # keep Cp=128 for C=31
    w_p = jnp.zeros((D, Cp), dtype=param_dtype)
    w_p = w_p.at[:, :C].set(weight.T.astype(param_dtype))
    b_p = jnp.zeros((1, Cp), dtype=jnp.float32)
    b_p = b_p.at[0, :C].set(bias.astype(jnp.float32))
    return w_p, b_p


def _round_up(v, m):
    return ((v + m - 1) // m) * m


def feat_classifier_forward(x, w_p, b_p, class_num, *, tile_b=1024,
                            out_dtype=jnp.float32, return_padded=False):
    """x: (B, D) f32 or bf16; w_p/b_p from prepare_feat_classifier_params.

    Returns (B, class_num) `out_dtype` (default) or, with return_padded=True,
    the raw (B, Cp) kernel output whose first class_num lanes are the logits
    (the remaining lanes are exactly bias-free zeros + 0-weight columns).
    """
    B, D = x.shape
    Cp = w_p.shape[1]

    if B <= 256:
        tb = B                                      # single full-extent block
    else:
        # >=2 grid steps (v7x has 2 TCs); tb a multiple of 16, capped at tile_b.
        tb = min(tile_b, _round_up(pl.cdiv(B, 2), 16))
    grid_b = pl.cdiv(B, tb)                         # partial last block allowed

    out = pl.pallas_call(
        _linear_kernel,
        out_shape=jax.ShapeDtypeStruct((B, Cp), out_dtype),
        grid_spec=pltpu.PrefetchScalarGridSpec(
            num_scalar_prefetch=0,
            grid=(grid_b,),
            in_specs=[
                pl.BlockSpec((tb, D), lambda i: (i, 0)),   # activations: tiled over B
                pl.BlockSpec((D, Cp), lambda i: (0, 0)),   # weight: resident
                pl.BlockSpec((1, Cp), lambda i: (0, 0)),   # bias: resident
            ],
            out_specs=pl.BlockSpec((tb, Cp), lambda i: (i, 0)),
        ),
        compiler_params=pltpu.CompilerParams(
            dimension_semantics=("parallel",),      # batch axis -> both TCs on v7x
        ),
    )(x, w_p, b_p)

    if return_padded:
        return out                                  # consumer slices/masks lanes
    return out[:, :class_num]


if __name__ == "__main__":
    class_num = 31
    bottleneck_dim = 256
    batch = 8

    key = jax.random.PRNGKey(0)
    k_x, k_w = jax.random.split(key)

    # Deterministic param init mirroring init_weights() for Linear:
    #   xavier_normal_(weight): std = sqrt(2 / (fan_in + fan_out)); zeros_(bias)
    xavier_std = (2.0 / (bottleneck_dim + class_num)) ** 0.5
    weight = xavier_std * jax.random.normal(
        k_w, (class_num, bottleneck_dim), dtype=jnp.float32
    )
    bias = jnp.zeros((class_num,), dtype=jnp.float32)

    x = jax.random.normal(k_x, (batch, bottleneck_dim), dtype=jnp.float32)

    # One-time parameter prep (transpose + pad + bf16 cast), then forward.
    w_p, b_p = prepare_feat_classifier_params(weight, bias)
    out = feat_classifier_forward(x, w_p, b_p, class_num)
    out = jax.block_until_ready(out)

    # Reference: same bf16 operand rounding, f32 accumulation (matches kernel math).
    x_bf = x.astype(jnp.bfloat16).astype(jnp.float32)
    w_bf = weight.astype(jnp.bfloat16).astype(jnp.float32)
    ref = x_bf @ w_bf.T + bias

    assert out.shape == (batch, class_num)
    assert out.dtype == jnp.float32
    assert jnp.allclose(out, ref, atol=1e-2, rtol=1e-2)

    # Exercise the padded-output fast path too (first class_num lanes == logits).
    out_p = jax.block_until_ready(
        feat_classifier_forward(x, w_p, b_p, class_num, return_padded=True)
    )
    assert out_p.shape == (batch, 128)
    assert jnp.allclose(out_p[:, :class_num], ref, atol=1e-2, rtol=1e-2)

    print("KERNEL_OK")
</pallas_src>

<mosaic_0001>
module attributes {stable_mosaic.version = 11 : i64} {
  func.func @_linear_kernel(%arg0: i32, %arg1: memref<8x256xf32, #tpu.memory_space<vmem>>, %arg2: memref<256x128xbf16, #tpu.memory_space<vmem>>, %arg3: memref<1x128xf32, #tpu.memory_space<vmem>>, %arg4: memref<8x128xf32, #tpu.memory_space<vmem>>) attributes {dimension_semantics = [#tpu.dimension_semantics<parallel>], iteration_bounds = array<i64: 1>, scalar_prefetch = 0 : i64, scratch_operands = 0 : i64, tpu.core_type = #tpu.core_type<tc>, window_params = [{transform_indices = @transform_0, window_bounds = array<i64: 8, 256>}, {pipeline_mode = #tpu.pipeline_mode<synchronous>, transform_indices = @transform_1, window_bounds = array<i64: 256, 128>}, {pipeline_mode = #tpu.pipeline_mode<synchronous>, transform_indices = @transform_2, window_bounds = array<i64: 1, 128>}, {transform_indices = @transform_3, window_bounds = array<i64: 8, 128>}]} {
    %c0 = arith.constant 0 : index
    %c0_0 = arith.constant 0 : index
    %0 = vector.load %arg1[%c0, %c0_0] : memref<8x256xf32, #tpu.memory_space<vmem>>, vector<8x256xf32>
    %1 = arith.truncf %0 : vector<8x256xf32> to vector<8x256xbf16>
    %c0_1 = arith.constant 0 : index
    %c0_2 = arith.constant 0 : index
    %2 = vector.load %arg2[%c0_1, %c0_2] : memref<256x128xbf16, #tpu.memory_space<vmem>>, vector<256x128xbf16>
    %cst = arith.constant dense<0.000000e+00> : vector<8x128xf32>
    %3 = tpu.matmul %1, %2, %cst {dimension_numbers = #tpu.dot_dimension_numbers<[1], [0], [0], [1], [0, 0, 1, 1], [], []>} : vector<8x256xbf16>, vector<256x128xbf16>, vector<8x128xf32> -> vector<8x128xf32>
    %c0_3 = arith.constant 0 : index
    %c0_4 = arith.constant 0 : index
    %4 = vector.load %arg3[%c0_3, %c0_4] : memref<1x128xf32, #tpu.memory_space<vmem>>, vector<1x128xf32>
    %5 = vector.broadcast %4 : vector<1x128xf32> to vector<8x128xf32>
    %6 = arith.addf %3, %5 : vector<8x128xf32>
    %c0_5 = arith.constant 0 : index
    %c0_6 = arith.constant 0 : index
    %7 = vector.load %arg4[%c0_5, %c0_6] : memref<8x128xf32, #tpu.memory_space<vmem>>, vector<8x128xf32>
    tpu.vector_store %arg4[%c0_5, %c0_6], %6 {strides = array<i32>} : memref<8x128xf32, #tpu.memory_space<vmem>>, vector<8x128xf32>,
    return
  }
  func.func @transform_0(%arg0: i32) -> (i32, i32) {
    %c0_i32 = arith.constant 0 : i32
    %c0_i32_0 = arith.constant 0 : i32
    return %arg0, %c0_i32 : i32, i32
  }
  func.func @transform_1(%arg0: i32) -> (i32, i32) {
    %c0_i32 = arith.constant 0 : i32
    %c0_i32_0 = arith.constant 0 : i32
    %c0_i32_1 = arith.constant 0 : i32
    return %c0_i32, %c0_i32_0 : i32, i32
  }
  func.func @transform_2(%arg0: i32) -> (i32, i32) {
    %c0_i32 = arith.constant 0 : i32
    %c0_i32_0 = arith.constant 0 : i32
    %c0_i32_1 = arith.constant 0 : i32
    return %c0_i32, %c0_i32_0 : i32, i32
  }
  func.func @transform_3(%arg0: i32) -> (i32, i32) {
    %c0_i32 = arith.constant 0 : i32
    %c0_i32_0 = arith.constant 0 : i32
    return %arg0, %c0_i32 : i32, i32
  }
}

</mosaic_0001>

<llo_original>
// kernel: tpu_custom_call.1
$region0: #{tpu_custom_call.1}
  #allocation0 [shape = 'u32[]', space=smem, size = 0x4, offset = 0x4, fixed_abs, tag = 'smem constant byte address 0x4 - core index']
  #allocation1 [shape = 'u32[72,128]{1,0:T(1,128)}', space=vmem, size = 0x9000, scoped, tag = 'internal scratch']
  %s0 = inlined_call_operand.hbm [shape: f32[8,256], index: 0, kind: input, shape index: {}]
  %s1 = inlined_call_operand.hbm [shape: bf16[256,128], index: 1, kind: input, shape index: {}]
  %s2 = inlined_call_operand.vmem [shape: f32[1,128], index: 2, kind: input, shape index: {}]
  %s3 = inlined_call_operand.hbm [shape: f32[8,128], index: 3, kind: output, shape index: {}]
  %s4 = sld [smem:[#allocation0]]
  $region30: #{tpu_custom_call.1} parent=0
    _
  %s6 = ssub.s32 1, %s4
  %s7 = scalar_select 0, %s6, %s4
  $region1: #{tpu_custom_call.1} parent=0
    #allocation2 [shape = 'u8[8192]{0}', space=vmem, size = 0x2000, scoped, tag = 'input window, operand 0, single buffered']
    #allocation3 [shape = 's32[1]{0}', space=sflag, size = 0x4, scoped, tag = 'scoped memory for tpu_custom_call.1']
    #allocation4 [shape = 's32[1]{0}', space=sflag, size = 0x4, scoped, tag = 'scoped memory for tpu_custom_call.1']
    #allocation5 [shape = 'u8[65536]{0}', space=vmem, size = 0x10000, scoped, tag = 'input window, operand 1, single buffered']
    #allocation6 [shape = 's32[1]{0}', space=sflag, size = 0x4, scoped, tag = 'scoped memory for tpu_custom_call.1']
    #allocation7 [shape = 'u8[4096]{0}', space=vmem, size = 0x1000, scoped, tag = 'output window, operand 0, single buffered']
    %8 = vsyncpa [#allocation3], 0
    %9 = vsyncpa [#allocation6], 0
    %10 = vsyncpa [#allocation4], 0
    // Predicated region
    $region2: #{tpu_custom_call.1} parent=1 // pred_check
      _
    $region3: #{tpu_custom_call.1} parent=1 // pred_check_branch
      %12 = sbr.rel (0) target = $region5
    $region4: #{tpu_custom_call.1} parent=1 // pred_region
      %14 = vsyncadd [#allocation3], 0
      %s16 = sshll.u32 %s0, 4
      %s17 = int_to_ptr.hbm [resolvable:$true] %s16
      %s18 = sshll.u32 [#allocation2], 4
      %s19 = int_to_ptr.vmem [resolvable:$true] %s18
      %21 = dma.hbm_to_vmem [thread:$0]  %s17, 256, %s19, [#allocation3]
    $region5: #{tpu_custom_call.1} parent=1 // pred_fallthru
      _
    // Predicated region
    $region6: #{tpu_custom_call.1} parent=1 // pred_check
      _
    $region7: #{tpu_custom_call.1} parent=1 // pred_check_branch
      %23 = sbr.rel (0) target = $region9
    $region8: #{tpu_custom_call.1} parent=1 // pred_region
      %25 = vsyncadd [#allocation6], 0
      %s26 = sshll.u32 %s1, 4
      %s27 = int_to_ptr.hbm [resolvable:$true] %s26
      %s28 = sshll.u32 [#allocation5], 4
      %s29 = int_to_ptr.vmem [resolvable:$true] %s28
      %34 = dma.hbm_to_vmem [thread:$0]  %s27, 2048, %s29, [#allocation6], 64, 64, 4
    $region9: #{tpu_custom_call.1} parent=1 // pred_fallthru
      _
    // Predicated region
    $region10: #{tpu_custom_call.1} parent=1 // pred_check
      _
    $region11: #{tpu_custom_call.1} parent=1 // pred_check_branch
      %36 = sbr.rel (0) target = $region13
    $region12: #{tpu_custom_call.1} parent=1 // pred_region
      _
    $region13: #{tpu_custom_call.1} parent=1 // pred_fallthru
      _
    // Predicated region
    $region14: #{tpu_custom_call.1} parent=1 // pred_check
      _
    $region15: #{tpu_custom_call.1} parent=1 // pred_check_branch
      %38 = sbr.rel (0) target = $region17
    $region16: #{tpu_custom_call.1} parent=1 // pred_region
      %40 = dma.done [#allocation3], 256
    $region17: #{tpu_custom_call.1} parent=1 // pred_fallthru
      _
    // Predicated region
    $region18: #{tpu_custom_call.1} parent=1 // pred_check
      _
    $region19: #{tpu_custom_call.1} parent=1 // pred_check_branch
      %42 = sbr.rel (0) target = $region21
    $region20: #{tpu_custom_call.1} parent=1 // pred_region
      %44 = dma.done [#allocation6], 2048
    $region21: #{tpu_custom_call.1} parent=1 // pred_fallthru
      _
    %v45 = vld [vmem:[#allocation2] sm:$0xff]
    %v46 = vld [vmem:[#allocation2 + $0x8] sm:$0xff]
    %v47 = vpack.c.bf16 %v45, %v45
    %v48 = vpack.c.bf16 %v46, %v46
    %v49 = vld [vmem:[#allocation5] sm:$0xf]
    %v50 = vld [vmem:[#allocation5 + $0x4] sm:$0xf]
    %v51 = vld [vmem:[#allocation5 + $0x8] sm:$0xf]
    %v52 = vld [vmem:[#allocation5 + $0xc] sm:$0xf]
    %v53 = vld [vmem:[#allocation5 + $0x10] sm:$0xf]
    %v54 = vld [vmem:[#allocation5 + $0x14] sm:$0xf]
    %v55 = vld [vmem:[#allocation5 + $0x18] sm:$0xf]
    %v56 = vld [vmem:[#allocation5 + $0x1c] sm:$0xf]
    %v57 = vld [vmem:[#allocation5 + $0x20] sm:$0xf]
    %v58 = vld [vmem:[#allocation5 + $0x24] sm:$0xf]
    %v59 = vld [vmem:[#allocation5 + $0x28] sm:$0xf]
    %v60 = vld [vmem:[#allocation5 + $0x2c] sm:$0xf]
    %v61 = vld [vmem:[#allocation5 + $0x30] sm:$0xf]
    %v62 = vld [vmem:[#allocation5 + $0x34] sm:$0xf]
    %v63 = vld [vmem:[#allocation5 + $0x38] sm:$0xf]
    %v64 = vld [vmem:[#allocation5 + $0x3c] sm:$0xf]
    %v65 = vld [vmem:[#allocation5 + $0x40] sm:$0xf]
    %v66 = vld [vmem:[#allocation5 + $0x44] sm:$0xf]
    %v67 = vld [vmem:[#allocation5 + $0x48] sm:$0xf]
    %v68 = vld [vmem:[#allocation5 + $0x4c] sm:$0xf]
    %v69 = vld [vmem:[#allocation5 + $0x50] sm:$0xf]
    %v70 = vld [vmem:[#allocation5 + $0x54] sm:$0xf]
    %v71 = vld [vmem:[#allocation5 + $0x58] sm:$0xf]
    %v72 = vld [vmem:[#allocation5 + $0x5c] sm:$0xf]
    %v73 = vld [vmem:[#allocation5 + $0x60] sm:$0xf]
    %v74 = vld [vmem:[#allocation5 + $0x64] sm:$0xf]
    %v75 = vld [vmem:[#allocation5 + $0x68] sm:$0xf]
    %v76 = vld [vmem:[#allocation5 + $0x6c] sm:$0xf]
    %v77 = vld [vmem:[#allocation5 + $0x70] sm:$0xf]
    %v78 = vld [vmem:[#allocation5 + $0x74] sm:$0xf]
    %v79 = vld [vmem:[#allocation5 + $0x78] sm:$0xf]
    %v80 = vld [vmem:[#allocation5 + $0x7c] sm:$0xf]
    %v81 = vld [vmem:[%s2] sm:$0x1]
    %v83 = vperm.slane %v81, 0
    %v117 = vunpack.c.l.b16 %v49
    %v118 = vunpack.c.l.b16 %v50
    %v119 = vunpack.c.l.b16 %v51
    %v120 = vunpack.c.l.b16 %v52
    %v121 = vunpack.c.l.b16 %v53
    %v122 = vunpack.c.l.b16 %v54
    %v123 = vunpack.c.l.b16 %v55
    %v124 = vunpack.c.l.b16 %v56
    %v125 = vunpack.c.l.b16 %v57
    %v126 = vunpack.c.l.b16 %v58
    %v127 = vunpack.c.l.b16 %v59
    %v128 = vunpack.c.l.b16 %v60
    %v129 = vunpack.c.l.b16 %v61
    %v130 = vunpack.c.l.b16 %v62
    %v131 = vunpack.c.l.b16 %v63
    %v132 = vunpack.c.l.b16 %v64
    %v133 = vunpack.c.l.b16 %v65
    %v134 = vunpack.c.l.b16 %v66
    %v135 = vunpack.c.l.b16 %v67
    %v136 = vunpack.c.l.b16 %v68
    %v137 = vunpack.c.l.b16 %v69
    %v138 = vunpack.c.l.b16 %v70
    %v139 = vunpack.c.l.b16 %v71
    %v140 = vunpack.c.l.b16 %v72
    %v141 = vunpack.c.l.b16 %v73
    %v142 = vunpack.c.l.b16 %v74
    %v143 = vunpack.c.l.b16 %v75
    %v144 = vunpack.c.l.b16 %v76
    %v145 = vunpack.c.l.b16 %v77
    %v146 = vunpack.c.l.b16 %v78
    %v147 = vunpack.c.l.b16 %v79
    %v148 = vunpack.c.l.b16 %v80
    %v149 = vpack.c.b16 %v118, %v117
    %v150 = vpack.c.b16 %v120, %v119
    %v151 = vpack.c.b16 %v122, %v121
    %v152 = vpack.c.b16 %v124, %v123
    %v153 = vpack.c.b16 %v126, %v125
    %v154 = vpack.c.b16 %v128, %v127
    %v155 = vpack.c.b16 %v130, %v129
    %v156 = vpack.c.b16 %v132, %v131
    %v157 = vpack.c.b16 %v134, %v133
    %v158 = vpack.c.b16 %v136, %v135
    %v159 = vpack.c.b16 %v138, %v137
    %v160 = vpack.c.b16 %v140, %v139
    %v161 = vpack.c.b16 %v142, %v141
    %v162 = vpack.c.b16 %v144, %v143
    %v163 = vpack.c.b16 %v146, %v145
    %v164 = vpack.c.b16 %v148, %v147
    %181 = vmatpush.bf16.msra.mxu0 %v156
    %182 = vmatpush.bf16.msra.mxu0 %v155
    %183 = vmatpush.bf16.msra.mxu0 %v154
    %184 = vmatpush.bf16.msra.mxu0 %v153
    %185 = vmatpush.bf16.msra.mxu0 %v152
    %186 = vmatpush.bf16.msra.mxu0 %v151
    %187 = vmatpush.bf16.msra.mxu0 %v150
    %188 = vmatpush.bf16.msra.mxu0 %v149
    %189 = vmatmul.bf16.gmra.mxu0 %v47
    %v190 = vpop.f32.mrf.mxu0
    %v191 = vadd.f32 %v83, %v190
    %v192 = vpop.f32.mrf.mxu0
    %193 = vdwg.mxu0
    %194 = vmatpush.bf16.msra.mxu0 %v164
    %195 = vmatpush.bf16.msra.mxu0 %v163
    %196 = vmatpush.bf16.msra.mxu0 %v162
    %197 = vmatpush.bf16.msra.mxu0 %v161
    %198 = vmatpush.bf16.msra.mxu0 %v160
    %199 = vmatpush.bf16.msra.mxu0 %v159
    %200 = vmatpush.bf16.msra.mxu0 %v158
    %201 = vmatpush.bf16.msra.mxu0 %v157
    %202 = vmatmul.bf16.gmra.mxu0 %v48
    %v203 = vpop.f32.mrf.mxu0
    %v204 = vadd.f32 %v191, %v203
    %v205 = vpop.f32.mrf.mxu0
    %206 = vdwg.mxu0
    %207 = vst [vmem:[#allocation7] sm:$0xff] %v204
    // Predicated region
    $region22: #{tpu_custom_call.1} parent=1 // pred_check
      _
    $region23: #{tpu_custom_call.1} parent=1 // pred_check_branch
      %209 = sbr.rel (0) target = $region25
    $region24: #{tpu_custom_call.1} parent=1 // pred_region
      %211 = vsyncadd [#allocation4], 0
      %s213 = sshll.u32 [#allocation7], 4
      %s214 = int_to_ptr.vmem [resolvable:$true] %s213
      %s215 = sshll.u32 %s3, 4
      %s216 = int_to_ptr.hbm [resolvable:$true] %s215
      %218 = dma.vmem_to_hbm [thread:$0]  %s214, 128, %s216, [#allocation4]
    $region25: #{tpu_custom_call.1} parent=1 // pred_fallthru
      _
    // Predicated region
    $region26: #{tpu_custom_call.1} parent=1 // pred_check
      _
    $region27: #{tpu_custom_call.1} parent=1 // pred_check_branch
      %220 = sbr.rel (0) target = $region29
    $region28: #{tpu_custom_call.1} parent=1 // pred_region
      %222 = dma.done [#allocation4], 128
    $region29: #{tpu_custom_call.1} parent=1 // pred_fallthru
      _
    %223 = vsyncpa [#allocation3], 1
    %224 = vsyncpa [#allocation6], 1
    %225 = vsyncpa [#allocation4], 1

</llo_original>
